<compile_context>
chip_gen: v7x
topology: tpu7x:2x2x1
jax: 0.10.0
libtpu: 0.0.40
codegen_flags: <defaults>
</compile_context>

<pallas_src>
import jax
import jax.numpy as jnp
from jax import lax
from jax.experimental import pallas as pl
from jax.experimental.pallas import tpu as pltpu

NUM_FEATURES = 784
NUM_CLASSES = 10


def _vmem_params():
    """(vmem_limit_bytes, default_tb_max) derived from physical VMEM with headroom."""
    try:
        phys = pltpu.get_tpu_info().vmem_capacity_bytes
    except Exception:
        phys = 64 << 20  # conservative fallback (v7x per-TC VMEM)
    limit = int(min(100 << 20, max(16 << 20, phys - (24 << 20))))
    tb_max = 8192 if phys >= (96 << 20) else 4096
    return limit, tb_max


def _choose_tb(batch, tb_max, min_steps=4):
    """Batch tile size. Either the full batch (tiny inputs) or a multiple of 128
    (required because the batch sits on the lane axis of the output block), sized
    so that there are at least `min_steps` grid steps to keep the pipeline busy."""
    if batch <= 128:
        return batch                          # single full block
    target = pl.cdiv(batch, min_steps)        # aim for >= min_steps grid steps
    target = ((target + 127) // 128) * 128    # lane-axis blocks must be 128-aligned
    tb = max(128, min(tb_max, target))
    return batch if tb >= batch else tb


def _softmax_regression_kernel(x_ref, w_ref, b_ref, out_ref):
    x = x_ref[...]          # [TB, F]
    w = w_ref[...]          # [C, F]   (PyTorch Linear layout; contracted on dim 1)
    b = b_ref[...]          # [C, 1]
    c = w.shape[0]

    # Class-major logits: [C, TB] -- batch on lanes (lane-dense output layout).
    logits_t = lax.dot_general(
        w, x,
        dimension_numbers=(((1,), (1,)), ((), ())),
        preferred_element_type=jnp.float32,
    ) + b

    # Numerically-stable softmax over classes (axis 0 = sublanes; batch stays on lanes).
    m = jnp.max(logits_t, axis=0, keepdims=True)       # [1, TB]
    e = jnp.exp(logits_t - m)
    denom = jnp.sum(e, axis=0, keepdims=True)          # [1, TB]
    probas_t = e / denom                                # exact; kernel is HBM-bound

    # Fused output slab: rows [0, C) = logits, rows [C, 2C) = probas.
    out_ref[:c, :] = logits_t.astype(out_ref.dtype)
    out_ref[c:, :] = probas_t.astype(out_ref.dtype)


def softmax_regression2(x, weight, bias, *, tb_max=None, min_steps=4):
    """Forward pass matching torch: logits = x @ W.T + b; probas = softmax(logits, dim=1).

    x:      [B, num_features] float32
    weight: [num_classes, num_features] float32  (PyTorch Linear layout, NOT transposed)
    bias:   [num_classes] float32
    returns (logits, probas), each [B, num_classes] float32
    """
    B, F = x.shape
    C = weight.shape[0]
    vmem_limit, auto_tb_max = _vmem_params()
    if tb_max is None:
        tb_max = auto_tb_max
    TB = _choose_tb(B, tb_max, min_steps)
    grid = (pl.cdiv(B, TB),)
    b2 = bias.reshape(C, 1)

    out_t = pl.pallas_call(
        _softmax_regression_kernel,
        out_shape=jax.ShapeDtypeStruct((2 * C, B), jnp.float32),
        grid=grid,
        in_specs=[
            pl.BlockSpec((TB, F), lambda i: (i, 0)),   # x: streamed over batch
            pl.BlockSpec((C, F), lambda i: (0, 0)),    # weight: resident in VMEM
            pl.BlockSpec((C, 1), lambda i: (0, 0)),    # bias: resident in VMEM
        ],
        out_specs=pl.BlockSpec((2 * C, TB), lambda i: (0, i)),   # lane-dense, class-major
        compiler_params=pltpu.CompilerParams(
            dimension_semantics=("parallel",),         # independent batch tiles
            vmem_limit_bytes=vmem_limit,
        ),
    )(x, weight, b2)

    logits = out_t[:C, :].T      # [B, C]
    probas = out_t[C:, :].T      # [B, C]
    return logits, probas


def _reference(x, weight, bias):
    logits = x @ weight.T + bias
    return logits, jax.nn.softmax(logits, axis=1)


if __name__ == "__main__":
    key = jax.random.PRNGKey(0)
    kx, kw, kb = jax.random.split(key, 3)

    # --- Case 1: module as specified (zeroed weight/bias), tiny batch, single tile ---
    B = 8
    x = jax.random.normal(kx, (B, NUM_FEATURES), dtype=jnp.float32)
    weight0 = jnp.zeros((NUM_CLASSES, NUM_FEATURES), dtype=jnp.float32)
    bias0 = jnp.zeros((NUM_CLASSES,), dtype=jnp.float32)

    logits, probas = softmax_regression2(x, weight0, bias0)
    jax.block_until_ready((logits, probas))
    ref_logits, ref_probas = _reference(x, weight0, bias0)
    assert logits.shape == (B, NUM_CLASSES) and probas.shape == (B, NUM_CLASSES)
    assert jnp.allclose(logits, ref_logits, atol=1e-5), "logits mismatch (zero params)"
    assert jnp.allclose(probas, ref_probas, atol=1e-5), "probas mismatch (zero params)"

    # --- Case 2: random params, multi-step grid (B=256 -> TB=128, 2 grid steps) ---
    B2 = 256
    x2 = jax.random.normal(kx, (B2, NUM_FEATURES), dtype=jnp.float32)
    weight = 0.05 * jax.random.normal(kw, (NUM_CLASSES, NUM_FEATURES), dtype=jnp.float32)
    bias = 0.1 * jax.random.normal(kb, (NUM_CLASSES,), dtype=jnp.float32)

    logits2, probas2 = softmax_regression2(x2, weight, bias)
    jax.block_until_ready((logits2, probas2))
    ref_logits2, ref_probas2 = _reference(x2, weight, bias)
    assert jnp.allclose(logits2, ref_logits2, rtol=1e-5, atol=1e-3), "logits mismatch (tiled)"
    assert jnp.allclose(probas2, ref_probas2, atol=1e-4), "probas mismatch (tiled)"

    # --- Case 3: ragged tail block (B=200 -> TB=128, grid=2, masked tail writeback) ---
    B3 = 200
    x3 = jax.random.normal(kb, (B3, NUM_FEATURES), dtype=jnp.float32)
    logits3, probas3 = softmax_regression2(x3, weight, bias)
    jax.block_until_ready((logits3, probas3))
    ref_logits3, ref_probas3 = _reference(x3, weight, bias)
    assert jnp.allclose(logits3, ref_logits3, rtol=1e-5, atol=1e-3), "logits mismatch (ragged)"
    assert jnp.allclose(probas3, ref_probas3, atol=1e-4), "probas mismatch (ragged)"

    print("KERNEL_OK")
</pallas_src>

<mosaic_0001>
module attributes {stable_mosaic.version = 11 : i64} {
  func.func @_softmax_regression_kernel(%arg0: i32, %arg1: memref<8x784xf32, #tpu.memory_space<vmem>>, %arg2: memref<10x784xf32, #tpu.memory_space<vmem>>, %arg3: memref<10x1xf32, #tpu.memory_space<vmem>>, %arg4: memref<20x8xf32, #tpu.memory_space<vmem>>) attributes {dimension_semantics = [#tpu.dimension_semantics<parallel>], iteration_bounds = array<i64: 1>, scalar_prefetch = 0 : i64, scratch_operands = 0 : i64, tpu.core_type = #tpu.core_type<tc>, window_params = [{transform_indices = @transform_0, window_bounds = array<i64: 8, 784>}, {pipeline_mode = #tpu.pipeline_mode<synchronous>, transform_indices = @transform_1, window_bounds = array<i64: 10, 784>}, {pipeline_mode = #tpu.pipeline_mode<synchronous>, transform_indices = @transform_2, window_bounds = array<i64: 10, 1>}, {transform_indices = @transform_3, window_bounds = array<i64: 20, 8>}]} {
    %c0 = arith.constant 0 : index
    %c0_0 = arith.constant 0 : index
    %0 = vector.load %arg1[%c0, %c0_0] : memref<8x784xf32, #tpu.memory_space<vmem>>, vector<8x784xf32>
    %c0_1 = arith.constant 0 : index
    %c0_2 = arith.constant 0 : index
    %1 = vector.load %arg2[%c0_1, %c0_2] : memref<10x784xf32, #tpu.memory_space<vmem>>, vector<10x784xf32>
    %c0_3 = arith.constant 0 : index
    %c0_4 = arith.constant 0 : index
    %2 = vector.load %arg3[%c0_3, %c0_4] : memref<10x1xf32, #tpu.memory_space<vmem>>, vector<10x1xf32>
    %cst = arith.constant dense<0.000000e+00> : vector<10x8xf32>
    %3 = tpu.matmul %1, %0, %cst {dimension_numbers = #tpu.dot_dimension_numbers<[1], [1], [0], [0], [0, 0, 1, 0], [], []>} : vector<10x784xf32>, vector<8x784xf32>, vector<10x8xf32> -> vector<10x8xf32>
    %4 = vector.broadcast %2 : vector<10x1xf32> to vector<10x8xf32>
    %5 = arith.addf %3, %4 : vector<10x8xf32>
    %cst_5 = arith.constant dense<0xFF800000> : vector<8xf32>
    %6 = vector.multi_reduction <maximumf>, %5, %cst_5 [0] : vector<10x8xf32> to vector<8xf32>
    %7 = vector.shape_cast %6 : vector<8xf32> to vector<1x8xf32>
    %8 = vector.broadcast %7 : vector<1x8xf32> to vector<10x8xf32>
    %9 = arith.subf %5, %8 : vector<10x8xf32>
    %10 = math.exp %9 : vector<10x8xf32>
    %cst_6 = arith.constant dense<0.000000e+00> : vector<8xf32>
    %11 = vector.multi_reduction <add>, %10, %cst_6 [0] : vector<10x8xf32> to vector<8xf32>
    %12 = vector.shape_cast %11 : vector<8xf32> to vector<1x8xf32>
    %13 = vector.broadcast %12 : vector<1x8xf32> to vector<10x8xf32>
    %14 = arith.divf %10, %13 : vector<10x8xf32>
    %c0_7 = arith.constant 0 : index
    %c0_8 = arith.constant 0 : index
    %15 = vector.load %arg4[%c0_7, %c0_8] : memref<20x8xf32, #tpu.memory_space<vmem>>, vector<10x8xf32>
    tpu.vector_store %arg4[%c0_7, %c0_8], %5 {strides = array<i32>} : memref<20x8xf32, #tpu.memory_space<vmem>>, vector<10x8xf32>,
    %c10 = arith.constant 10 : index
    %c0_9 = arith.constant 0 : index
    %16 = vector.load %arg4[%c10, %c0_9] : memref<20x8xf32, #tpu.memory_space<vmem>>, vector<10x8xf32>
    tpu.vector_store %arg4[%c10, %c0_9], %14 {strides = array<i32>} : memref<20x8xf32, #tpu.memory_space<vmem>>, vector<10x8xf32>,
    return
  }
  func.func @transform_0(%arg0: i32) -> (i32, i32) {
    %c0_i32 = arith.constant 0 : i32
    %c0_i32_0 = arith.constant 0 : i32
    return %arg0, %c0_i32 : i32, i32
  }
  func.func @transform_1(%arg0: i32) -> (i32, i32) {
    %c0_i32 = arith.constant 0 : i32
    %c0_i32_0 = arith.constant 0 : i32
    %c0_i32_1 = arith.constant 0 : i32
    return %c0_i32, %c0_i32_0 : i32, i32
  }
  func.func @transform_2(%arg0: i32) -> (i32, i32) {
    %c0_i32 = arith.constant 0 : i32
    %c0_i32_0 = arith.constant 0 : i32
    %c0_i32_1 = arith.constant 0 : i32
    return %c0_i32, %c0_i32_0 : i32, i32
  }
  func.func @transform_3(%arg0: i32) -> (i32, i32) {
    %c0_i32 = arith.constant 0 : i32
    %c0_i32_0 = arith.constant 0 : i32
    return %c0_i32, %arg0 : i32, i32
  }
}

</mosaic_0001>

<llo_original>
// kernel: tpu_custom_call.1
$region0: #{tpu_custom_call.1}
  #allocation0 [shape = 'u32[]', space=smem, size = 0x4, offset = 0x4, fixed_abs, tag = 'smem constant byte address 0x4 - core index']
  #allocation1 [shape = 'u32[144,128]{1,0:T(1,128)}', space=vmem, size = 0x12000, scoped, tag = 'internal scratch']
  %s0 = inlined_call_operand.hbm [shape: f32[8,784], index: 0, kind: input, shape index: {}]
  %s1 = inlined_call_operand.hbm [shape: f32[10,784], index: 1, kind: input, shape index: {}]
  %s2 = inlined_call_operand.vmem [shape: f32[10,1], index: 2, kind: input, shape index: {}]
  %s3 = inlined_call_operand.vmem [shape: f32[20,8], index: 3, kind: output, shape index: {}]
  %s4 = sld [smem:[#allocation0]]
  $region30: #{tpu_custom_call.1} parent=0
    _
  %s6 = ssub.s32 1, %s4
  %s7 = scalar_select 0, %s6, %s4
  $region1: #{tpu_custom_call.1} parent=0
    #allocation2 [shape = 'u8[28672]{0}', space=vmem, size = 0x7000, scoped, tag = 'input window, operand 0, single buffered']
    #allocation3 [shape = 's32[1]{0}', space=sflag, size = 0x4, scoped, tag = 'scoped memory for tpu_custom_call.1']
    #allocation4 [shape = 'u8[57344]{0}', space=vmem, size = 0xe000, scoped, tag = 'input window, operand 1, single buffered']
    #allocation5 [shape = 's32[1]{0}', space=sflag, size = 0x4, scoped, tag = 'scoped memory for tpu_custom_call.1']
    %8 = vsyncpa [#allocation3], 0
    %9 = vsyncpa [#allocation5], 0
    // Predicated region
    $region2: #{tpu_custom_call.1} parent=1 // pred_check
      _
    $region3: #{tpu_custom_call.1} parent=1 // pred_check_branch
      %11 = sbr.rel (0) target = $region5
    $region4: #{tpu_custom_call.1} parent=1 // pred_region
      %s13 = ssub.s32 896, 896
      %14 = vsyncadd [#allocation3], %s13
      %s16 = sshll.u32 [#allocation2], 4
      %s17 = int_to_ptr.vmem [resolvable:$true] %s16
      %19 = dma.hbm_to_vmem [thread:$0]  %s0, 896, %s17, [#allocation3]
    $region5: #{tpu_custom_call.1} parent=1 // pred_fallthru
      _
    // Predicated region
    $region6: #{tpu_custom_call.1} parent=1 // pred_check
      _
    $region7: #{tpu_custom_call.1} parent=1 // pred_check_branch
      %21 = sbr.rel (0) target = $region9
    $region8: #{tpu_custom_call.1} parent=1 // pred_region
      %s23 = ssub.s32 1792, 1792
      %24 = vsyncadd [#allocation5], %s23
      %s25 = sshll.u32 [#allocation4], 4
      %s26 = int_to_ptr.vmem [resolvable:$true] %s25
      %31 = dma.hbm_to_vmem [thread:$0]  %s1, 1792, %s26, [#allocation5], 896, 896, 56
    $region9: #{tpu_custom_call.1} parent=1 // pred_fallthru
      _
    // Predicated region
    $region10: #{tpu_custom_call.1} parent=1 // pred_check
      _
    $region11: #{tpu_custom_call.1} parent=1 // pred_check_branch
      %33 = sbr.rel (0) target = $region13
    $region12: #{tpu_custom_call.1} parent=1 // pred_region
      _
    $region13: #{tpu_custom_call.1} parent=1 // pred_fallthru
      _
    // Predicated region
    $region14: #{tpu_custom_call.1} parent=1 // pred_check
      _
    $region15: #{tpu_custom_call.1} parent=1 // pred_check_branch
      %35 = sbr.rel (0) target = $region17
    $region16: #{tpu_custom_call.1} parent=1 // pred_region
      %36 = dma.done [#allocation3], 896
    $region17: #{tpu_custom_call.1} parent=1 // pred_fallthru
      _
    // Predicated region
    $region18: #{tpu_custom_call.1} parent=1 // pred_check
      _
    $region19: #{tpu_custom_call.1} parent=1 // pred_check_branch
      %38 = sbr.rel (0) target = $region21
    $region20: #{tpu_custom_call.1} parent=1 // pred_region
      %39 = dma.done [#allocation5], 1792
    $region21: #{tpu_custom_call.1} parent=1 // pred_fallthru
      _
    %v40 = vld [vmem:[#allocation2] sm:$0xff]
    %v41 = vld [vmem:[#allocation2 + $0x8] sm:$0xff]
    %v42 = vld [vmem:[#allocation2 + $0x10] sm:$0xff]
    %v43 = vld [vmem:[#allocation2 + $0x18] sm:$0xff]
    %v44 = vld [vmem:[#allocation2 + $0x20] sm:$0xff]
    %v45 = vld [vmem:[#allocation2 + $0x28] sm:$0xff]
    %v46 = vld [vmem:[#allocation2 + $0x30] sm:$0xff]
    %v47 = vld [vmem:[#allocation4] sm:$0xff]
    %v48 = vld [vmem:[#allocation4 + $0x8] sm:$0xff]
    %v49 = vld [vmem:[#allocation4 + $0x10] sm:$0xff]
    %v50 = vld [vmem:[#allocation4 + $0x18] sm:$0xff]
    %v51 = vld [vmem:[#allocation4 + $0x20] sm:$0xff]
    %v52 = vld [vmem:[#allocation4 + $0x28] sm:$0xff]
    %v53 = vld [vmem:[#allocation4 + $0x30] sm:$0xff]
    %v54 = vld [vmem:[#allocation4 + $0x38] sm:$0x3]
    %v55 = vld [vmem:[#allocation4 + $0x40] sm:$0x3]
    %v56 = vld [vmem:[#allocation4 + $0x48] sm:$0x3]
    %v57 = vld [vmem:[#allocation4 + $0x50] sm:$0x3]
    %v58 = vld [vmem:[#allocation4 + $0x58] sm:$0x3]
    %v59 = vld [vmem:[#allocation4 + $0x60] sm:$0x3]
    %v60 = vld [vmem:[#allocation4 + $0x68] sm:$0x3]
    %v61 = vld [vmem:[%s2] sm:$0xff]
    %v62 = vld [vmem:[%s2 + $0x8] sm:$0x3]
    %64 = vset.pattern.permute.xlu0 0
    %65 = vperm.xlu0 %64, %v61
    %v66 = vpop.permute.xlu0 %65
    %69 = vset.pattern.permute.xlu0 0
    %70 = vperm.xlu0 %69, %v62
    %v71 = vpop.permute.xlu0 %70
    %vm73 = vcmask 130048
    %v75 = vsel %vm73, %v53, 0
    %v78 = vsel %vm73, %v60, 0
    %v81 = vsel %vm73, %v46, 0
    %83 = vmatprep.subr.mxu0 %v41
    %84 = vmatpush1.xpose.msra.mxu0 %v40
    %85 = vmatprep.subr.mxu0 0.0
    %86 = vmatpush1.xpose.msra.mxu0 0.0
    %87 = vmatprep.subr.mxu0 0.0
    %88 = vmatpush1.xpose.msra.mxu0 0.0
    %89 = vmatprep.subr.mxu0 0.0
    %90 = vmatpush1.xpose.msra.mxu0 0.0
    %91 = vmatprep.subr.mxu0 0.0
    %92 = vmatpush1.xpose.msra.mxu0 0.0
    %93 = vmatprep.subr.mxu0 0.0
    %94 = vmatpush1.xpose.msra.mxu0 0.0
    %95 = vmatprep.subr.mxu0 0.0
    %96 = vmatpush1.xpose.msra.mxu0 0.0
    %97 = vmatprep.subr.mxu0 0.0
    %98 = vmatpush1.xpose.msra.mxu0 0.0
    %99 = vmatprep.subr.mxu0 0.0
    %100 = vmatpush1.xpose.msra.mxu0 0.0
    %101 = vmatprep.subr.mxu0 0.0
    %102 = vmatpush1.xpose.msra.mxu0 0.0
    %103 = vmatprep.subr.mxu0 0.0
    %104 = vmatpush1.xpose.msra.mxu0 0.0
    %105 = vmatprep.subr.mxu0 0.0
    %106 = vmatpush1.xpose.msra.mxu0 0.0
    %107 = vmatprep.subr.mxu0 0.0
    %108 = vmatpush1.xpose.msra.mxu0 0.0
    %109 = vmatprep.subr.mxu0 0.0
    %110 = vmatpush1.xpose.msra.mxu0 0.0
    %111 = vmatprep.subr.mxu0 0.0
    %112 = vmatpush1.xpose.msra.mxu0 0.0
    %113 = vmatprep.subr.mxu0 0.0
    %114 = vmatpush1.xpose.msra.mxu0 0.0
    %115 = vmatprep.subr.mxu0 0.0
    %116 = vmatpush1.xpose.msra.mxu0 0.0
    %117 = vmatprep.subr.mxu0 0.0
    %118 = vmatpush1.xpose.msra.mxu0 0.0
    %119 = vmatprep.subr.mxu0 0.0
    %120 = vmatpush1.xpose.msra.mxu0 0.0
    %121 = vmatprep.subr.mxu0 0.0
    %122 = vmatpush1.xpose.msra.mxu0 0.0
    %123 = vmatprep.subr.mxu0 0.0
    %124 = vmatpush1.xpose.msra.mxu0 0.0
    %125 = vmatprep.subr.mxu0 0.0
    %126 = vmatpush1.xpose.msra.mxu0 0.0
    %127 = vmatprep.subr.mxu0 0.0
    %128 = vmatpush1.xpose.msra.mxu0 0.0
    %129 = vmatprep.subr.mxu0 0.0
    %130 = vmatpush1.xpose.msra.mxu0 0.0
    %131 = vmatprep.subr.mxu0 0.0
    %132 = vmatpush1.xpose.msra.mxu0 0.0
    %133 = vmatprep.subr.mxu0 0.0
    %134 = vmatpush1.xpose.msra.mxu0 0.0
    %135 = vmatprep.subr.mxu0 0.0
    %136 = vmatpush1.xpose.msra.mxu0 0.0
    %137 = vmatprep.subr.mxu0 0.0
    %138 = vmatpush1.xpose.msra.mxu0 0.0
    %139 = vmatprep.subr.mxu0 0.0
    %140 = vmatpush1.xpose.msra.mxu0 0.0
    %141 = vmatprep.subr.mxu0 0.0
    %142 = vmatpush1.xpose.msra.mxu0 0.0
    %143 = vmatprep.subr.mxu0 0.0
    %144 = vmatpush1.xpose.msra.mxu0 0.0
    %145 = vmatprep.subr.mxu0 0.0
    %146 = vmatpush1.xpose.msra.mxu0 0.0
    %147 = vmatprep.mubr.f32.mxu0 %v48
    %148 = vmatmul.mubr.f32.gmra.mrb[0].mxu0 %v47
    %v149 = vpop.f32.mrb[0].mxu0
    %v150 = vadd.f32 %v66, %v149
    %v151 = vpop.f32.mrb[0].mxu0
    %152 = vmatprep.mubr.f32.mxu0 %v55
    %153 = vmatmul.mubr.f32.gmra.mrb[0].mxu0 %v54
    %v154 = vpop.f32.mrb[0].mxu0
    %v155 = vadd.f32 %v71, %v154
    %v156 = vpop.f32.mrb[0].mxu0
    %157 = vdwg.mxu0
    %158 = vmatprep.subr.mxu0 %v43
    %159 = vmatpush1.xpose.msra.mxu0 %v42
    %160 = vmatprep.subr.mxu0 0.0
    %161 = vmatpush1.xpose.msra.mxu0 0.0
    %162 = vmatprep.subr.mxu0 0.0
    %163 = vmatpush1.xpose.msra.mxu0 0.0
    %164 = vmatprep.subr.mxu0 0.0
    %165 = vmatpush1.xpose.msra.mxu0 0.0
    %166 = vmatprep.subr.mxu0 0.0
    %167 = vmatpush1.xpose.msra.mxu0 0.0
    %168 = vmatprep.subr.mxu0 0.0
    %169 = vmatpush1.xpose.msra.mxu0 0.0
    %170 = vmatprep.subr.mxu0 0.0
    %171 = vmatpush1.xpose.msra.mxu0 0.0
    %172 = vmatprep.subr.mxu0 0.0
    %173 = vmatpush1.xpose.msra.mxu0 0.0
    %174 = vmatprep.subr.mxu0 0.0
    %175 = vmatpush1.xpose.msra.mxu0 0.0
    %176 = vmatprep.subr.mxu0 0.0
    %177 = vmatpush1.xpose.msra.mxu0 0.0
    %178 = vmatprep.subr.mxu0 0.0
    %179 = vmatpush1.xpose.msra.mxu0 0.0
    %180 = vmatprep.subr.mxu0 0.0
    %181 = vmatpush1.xpose.msra.mxu0 0.0
    %182 = vmatprep.subr.mxu0 0.0
    %183 = vmatpush1.xpose.msra.mxu0 0.0
    %184 = vmatprep.subr.mxu0 0.0
    %185 = vmatpush1.xpose.msra.mxu0 0.0
    %186 = vmatprep.subr.mxu0 0.0
    %187 = vmatpush1.xpose.msra.mxu0 0.0
    %188 = vmatprep.subr.mxu0 0.0
    %189 = vmatpush1.xpose.msra.mxu0 0.0
    %190 = vmatprep.subr.mxu0 0.0
    %191 = vmatpush1.xpose.msra.mxu0 0.0
    %192 = vmatprep.subr.mxu0 0.0
    %193 = vmatpush1.xpose.msra.mxu0 0.0
    %194 = vmatprep.subr.mxu0 0.0
    %195 = vmatpush1.xpose.msra.mxu0 0.0
    %196 = vmatprep.subr.mxu0 0.0
    %197 = vmatpush1.xpose.msra.mxu0 0.0
    %198 = vmatprep.subr.mxu0 0.0
    %199 = vmatpush1.xpose.msra.mxu0 0.0
    %200 = vmatprep.subr.mxu0 0.0
    %201 = vmatpush1.xpose.msra.mxu0 0.0
    %202 = vmatprep.subr.mxu0 0.0
    %203 = vmatpush1.xpose.msra.mxu0 0.0
    %204 = vmatprep.subr.mxu0 0.0
    %205 = vmatpush1.xpose.msra.mxu0 0.0
    %206 = vmatprep.subr.mxu0 0.0
    %207 = vmatpush1.xpose.msra.mxu0 0.0
    %208 = vmatprep.subr.mxu0 0.0
    %209 = vmatpush1.xpose.msra.mxu0 0.0
    %210 = vmatprep.subr.mxu0 0.0
    %211 = vmatpush1.xpose.msra.mxu0 0.0
    %212 = vmatprep.subr.mxu0 0.0
    %213 = vmatpush1.xpose.msra.mxu0 0.0
    %214 = vmatprep.subr.mxu0 0.0
    %215 = vmatpush1.xpose.msra.mxu0 0.0
    %216 = vmatprep.subr.mxu0 0.0
    %217 = vmatpush1.xpose.msra.mxu0 0.0
    %218 = vmatprep.subr.mxu0 0.0
    %219 = vmatpush1.xpose.msra.mxu0 0.0
    %220 = vmatprep.subr.mxu0 0.0
    %221 = vmatpush1.xpose.msra.mxu0 0.0
    %222 = vmatprep.mubr.f32.mxu0 %v50
    %223 = vmatmul.mubr.f32.gmra.mrb[0].mxu0 %v49
    %v224 = vpop.f32.mrb[0].mxu0
    %v225 = vadd.f32 %v150, %v224
    %v226 = vpop.f32.mrb[0].mxu0
    %227 = vmatprep.mubr.f32.mxu0 %v57
    %228 = vmatmul.mubr.f32.gmra.mrb[0].mxu0 %v56
    %v229 = vpop.f32.mrb[0].mxu0
    %v230 = vadd.f32 %v155, %v229
    %v231 = vpop.f32.mrb[0].mxu0
    %232 = vdwg.mxu0
    %233 = vmatprep.subr.mxu0 %v45
    %234 = vmatpush1.xpose.msra.mxu0 %v44
    %235 = vmatprep.subr.mxu0 0.0
    %236 = vmatpush1.xpose.msra.mxu0 0.0
    %237 = vmatprep.subr.mxu0 0.0
    %238 = vmatpush1.xpose.msra.mxu0 0.0
    %239 = vmatprep.subr.mxu0 0.0
    %240 = vmatpush1.xpose.msra.mxu0 0.0
    %241 = vmatprep.subr.mxu0 0.0
    %242 = vmatpush1.xpose.msra.mxu0 0.0
    %243 = vmatprep.subr.mxu0 0.0
    %244 = vmatpush1.xpose.msra.mxu0 0.0
    %245 = vmatprep.subr.mxu0 0.0
    %246 = vmatpush1.xpose.msra.mxu0 0.0
    %247 = vmatprep.subr.mxu0 0.0
    %248 = vmatpush1.xpose.msra.mxu0 0.0
    %249 = vmatprep.subr.mxu0 0.0
    %250 = vmatpush1.xpose.msra.mxu0 0.0
    %251 = vmatprep.subr.mxu0 0.0
    %252 = vmatpush1.xpose.msra.mxu0 0.0
    %253 = vmatprep.subr.mxu0 0.0
    %254 = vmatpush1.xpose.msra.mxu0 0.0
    %255 = vmatprep.subr.mxu0 0.0
    %256 = vmatpush1.xpose.msra.mxu0 0.0
    %257 = vmatprep.subr.mxu0 0.0
    %258 = vmatpush1.xpose.msra.mxu0 0.0
    %259 = vmatprep.subr.mxu0 0.0
    %260 = vmatpush1.xpose.msra.mxu0 0.0
    %261 = vmatprep.subr.mxu0 0.0
    %262 = vmatpush1.xpose.msra.mxu0 0.0
    %263 = vmatprep.subr.mxu0 0.0
    %264 = vmatpush1.xpose.msra.mxu0 0.0
    %265 = vmatprep.subr.mxu0 0.0
    %266 = vmatpush1.xpose.msra.mxu0 0.0
    %267 = vmatprep.subr.mxu0 0.0
    %268 = vmatpush1.xpose.msra.mxu0 0.0
    %269 = vmatprep.subr.mxu0 0.0
    %270 = vmatpush1.xpose.msra.mxu0 0.0
    %271 = vmatprep.subr.mxu0 0.0
    %272 = vmatpush1.xpose.msra.mxu0 0.0
    %273 = vmatprep.subr.mxu0 0.0
    %274 = vmatpush1.xpose.msra.mxu0 0.0
    %275 = vmatprep.subr.mxu0 0.0
    %276 = vmatpush1.xpose.msra.mxu0 0.0
    %277 = vmatprep.subr.mxu0 0.0
    %278 = vmatpush1.xpose.msra.mxu0 0.0
    %279 = vmatprep.subr.mxu0 0.0
    %280 = vmatpush1.xpose.msra.mxu0 0.0
    %281 = vmatprep.subr.mxu0 0.0
    %282 = vmatpush1.xpose.msra.mxu0 0.0
    %283 = vmatprep.subr.mxu0 0.0
    %284 = vmatpush1.xpose.msra.mxu0 0.0
    %285 = vmatprep.subr.mxu0 0.0
    %286 = vmatpush1.xpose.msra.mxu0 0.0
    %287 = vmatprep.subr.mxu0 0.0
    %288 = vmatpush1.xpose.msra.mxu0 0.0
    %289 = vmatprep.subr.mxu0 0.0
    %290 = vmatpush1.xpose.msra.mxu0 0.0
    %291 = vmatprep.subr.mxu0 0.0
    %292 = vmatpush1.xpose.msra.mxu0 0.0
    %293 = vmatprep.subr.mxu0 0.0
    %294 = vmatpush1.xpose.msra.mxu0 0.0
    %295 = vmatprep.subr.mxu0 0.0
    %296 = vmatpush1.xpose.msra.mxu0 0.0
    %297 = vmatprep.mubr.f32.mxu0 %v52
    %298 = vmatmul.mubr.f32.gmra.mrb[0].mxu0 %v51
    %v299 = vpop.f32.mrb[0].mxu0
    %v300 = vadd.f32 %v225, %v299
    %v301 = vpop.f32.mrb[0].mxu0
    %302 = vmatprep.mubr.f32.mxu0 %v59
    %303 = vmatmul.mubr.f32.gmra.mrb[0].mxu0 %v58
    %v304 = vpop.f32.mrb[0].mxu0
    %v305 = vadd.f32 %v230, %v304
    %v306 = vpop.f32.mrb[0].mxu0
    %307 = vdwg.mxu0
    %308 = vmatprep.subr.mxu0 0.0
    %309 = vmatpush1.xpose.msra.mxu0 %v81
    %310 = vmatprep.subr.mxu0 0.0
    %311 = vmatpush1.xpose.msra.mxu0 0.0
    %312 = vmatprep.subr.mxu0 0.0
    %313 = vmatpush1.xpose.msra.mxu0 0.0
    %314 = vmatprep.subr.mxu0 0.0
    %315 = vmatpush1.xpose.msra.mxu0 0.0
    %316 = vmatprep.subr.mxu0 0.0
    %317 = vmatpush1.xpose.msra.mxu0 0.0
    %318 = vmatprep.subr.mxu0 0.0
    %319 = vmatpush1.xpose.msra.mxu0 0.0
    %320 = vmatprep.subr.mxu0 0.0
    %321 = vmatpush1.xpose.msra.mxu0 0.0
    %322 = vmatprep.subr.mxu0 0.0
    %323 = vmatpush1.xpose.msra.mxu0 0.0
    %324 = vmatprep.subr.mxu0 0.0
    %325 = vmatpush1.xpose.msra.mxu0 0.0
    %326 = vmatprep.subr.mxu0 0.0
    %327 = vmatpush1.xpose.msra.mxu0 0.0
    %328 = vmatprep.subr.mxu0 0.0
    %329 = vmatpush1.xpose.msra.mxu0 0.0
    %330 = vmatprep.subr.mxu0 0.0
    %331 = vmatpush1.xpose.msra.mxu0 0.0
    %332 = vmatprep.subr.mxu0 0.0
    %333 = vmatpush1.xpose.msra.mxu0 0.0
    %334 = vmatprep.subr.mxu0 0.0
    %335 = vmatpush1.xpose.msra.mxu0 0.0
    %336 = vmatprep.subr.mxu0 0.0
    %337 = vmatpush1.xpose.msra.mxu0 0.0
    %338 = vmatprep.subr.mxu0 0.0
    %339 = vmatpush1.xpose.msra.mxu0 0.0
    %340 = vmatprep.subr.mxu0 0.0
    %341 = vmatpush1.xpose.msra.mxu0 0.0
    %342 = vmatprep.subr.mxu0 0.0
    %343 = vmatpush1.xpose.msra.mxu0 0.0
    %344 = vmatprep.subr.mxu0 0.0
    %345 = vmatpush1.xpose.msra.mxu0 0.0
    %346 = vmatprep.subr.mxu0 0.0
    %347 = vmatpush1.xpose.msra.mxu0 0.0
    %348 = vmatprep.subr.mxu0 0.0
    %349 = vmatpush1.xpose.msra.mxu0 0.0
    %350 = vmatprep.subr.mxu0 0.0
    %351 = vmatpush1.xpose.msra.mxu0 0.0
    %352 = vmatprep.subr.mxu0 0.0
    %353 = vmatpush1.xpose.msra.mxu0 0.0
    %354 = vmatprep.subr.mxu0 0.0
    %355 = vmatpush1.xpose.msra.mxu0 0.0
    %356 = vmatprep.subr.mxu0 0.0
    %357 = vmatpush1.xpose.msra.mxu0 0.0
    %358 = vmatprep.subr.mxu0 0.0
    %359 = vmatpush1.xpose.msra.mxu0 0.0
    %360 = vmatprep.subr.mxu0 0.0
    %361 = vmatpush1.xpose.msra.mxu0 0.0
    %362 = vmatprep.subr.mxu0 0.0
    %363 = vmatpush1.xpose.msra.mxu0 0.0
    %364 = vmatprep.subr.mxu0 0.0
    %365 = vmatpush1.xpose.msra.mxu0 0.0
    %366 = vmatprep.subr.mxu0 0.0
    %367 = vmatpush1.xpose.msra.mxu0 0.0
    %368 = vmatprep.subr.mxu0 0.0
    %369 = vmatpush1.xpose.msra.mxu0 0.0
    %370 = vmatprep.subr.mxu0 0.0
    %371 = vmatpush1.xpose.msra.mxu0 0.0
    %372 = vmatprep.mubr.f32.mxu0 0.0
    %373 = vmatmul.mubr.f32.gmra.mrb[0].mxu0 %v75
    %v374 = vpop.f32.mrb[0].mxu0
    %v375 = vadd.f32 %v300, %v374
    %v376 = vpop.f32.mrb[0].mxu0
    %377 = vmatprep.mubr.f32.mxu0 0.0
    %378 = vmatmul.mubr.f32.gmra.mrb[0].mxu0 %v78
    %v379 = vpop.f32.mrb[0].mxu0
    %v380 = vadd.f32 %v305, %v379
    %v381 = vpop.f32.mrb[0].mxu0
    %382 = vdwg.mxu0
    %vm383 = vcmask 64512
    %v384 = vsel %vm383, %v375, -inf
    %vm385 = vcmask 58368
    %v386 = vsel %vm385, %v380, -inf
    %v387 = vmax.f32 %v384, %v386
    %v388 = vrot.slane %v387, 4
    %v389 = vmax.f32 %v387, %v388
    %v390 = vrot.slane %v389, 2
    %v391 = vmax.f32 %v389, %v390
    %v392 = vrot.slane %v391, 1
    %v393 = vmax.f32 %v391, %v392
    %v394 = vsub.f32 %v375, %v393
    %v395 = vsub.f32 %v380, %v393
    %v396 = vmul.f32 %v394, 1.442695
    %v397 = vpow.pop %v396
    %v398 = vmul.f32 %v395, 1.442695
    %v399 = vpow.pop %v398
    %v400 = vsel %vm383, %v397, 0.0
    %v401 = vsel %vm385, %v399, 0.0
    %v402 = vadd.f32 %v400, %v401
    %v403 = vrot.slane %v402, 4
    %v404 = vadd.f32 %v402, %v403
    %v405 = vrot.slane %v404, 2
    %v406 = vadd.f32 %v404, %v405
    %v407 = vrot.slane %v406, 1
    %v408 = vadd.f32 %v406, %v407
    %v409 = vrcp.pop %v408
    %v410 = vmul.f32 %v397, %v409
    %v411 = vmul.f32 %v399, %v409
    %412 = vst.msk [vmem:[%s3] sm:$0xff] %vm383, %v375
    %413 = vst.msk [vmem:[%s3 + $0x8] sm:$0x3] %vm385, %v380
    %414 = vst.msk [vmem:[%s3 + $0xa] sm:$0xff] %vm383, %v410
    %415 = vst.msk [vmem:[%s3 + $0x12] sm:$0x3] %vm385, %v411
    // Predicated region
    $region22: #{tpu_custom_call.1} parent=1 // pred_check
      _
    $region23: #{tpu_custom_call.1} parent=1 // pred_check_branch
      %417 = sbr.rel (0) target = $region25
    $region24: #{tpu_custom_call.1} parent=1 // pred_region
      _
    $region25: #{tpu_custom_call.1} parent=1 // pred_fallthru
      _
    // Predicated region
    $region26: #{tpu_custom_call.1} parent=1 // pred_check
      _
    $region27: #{tpu_custom_call.1} parent=1 // pred_check_branch
      %419 = sbr.rel (0) target = $region29
    $region28: #{tpu_custom_call.1} parent=1 // pred_region
      _
    $region29: #{tpu_custom_call.1} parent=1 // pred_fallthru
      _
    %420 = vsyncpa [#allocation3], 1
    %421 = vsyncpa [#allocation5], 1

</llo_original>
